<compile_context>
chip_gen: v7x
topology: tpu7x:2x2x1
jax: 0.10.0
libtpu: 0.0.40
codegen_flags: <defaults>
</compile_context>

<pallas_src>
import functools

import jax
import jax.numpy as jnp
from jax import lax
from jax.experimental import pallas as pl
from jax.experimental.pallas import tpu as pltpu

LANE = 128     # vreg lane width
SUBLANE = 8    # f32 sublane tile


def _chip_config():
    """Per-generation (ncores, max_tile_rows, core_axis_semantics)."""
    try:
        kind = jax.devices()[0].device_kind.lower()
    except Exception:
        kind = ""
    if "v7" in kind or "7x" in kind:
        # v7x: 2 TensorCores/chip, 3.2 TB/s HBM, 32 MiB scoped-VMEM default.
        # 8192x128 f32 tiles: 2 inputs x 2 bufs x 4 MiB = 16 MiB -> fits.
        return 2, 8192, pltpu.CORE_PARALLEL
    if "v6" in kind or "6e" in kind:
        # v6e: 1 TC, 32 MiB scoped-VMEM default -> 8192-row tiles fit.
        return 1, 8192, pltpu.ARBITRARY
    # v5e and unknown chips: 16 MiB scoped-VMEM default -> stay at 4096 rows
    # (2 inputs x 2 pipeline buffers x 2 MiB = 8 MiB).
    return 1, 4096, pltpu.ARBITRARY


def _mape_kernel(x_ref, t_ref, o_ref, *, valid_rows: int, approx: bool):
    """Accumulate sum(|x - t| / t) for this core's row range into o_ref."""
    c = pl.program_id(0)            # core axis (CORE_PARALLEL on v7x, size 1 elsewhere)
    j = pl.program_id(1)            # sequential reduction axis
    nj = pl.num_programs(1)
    tile_rows, lane = x_ref.shape

    @pl.when(j == 0)
    def _():
        o_ref[...] = jnp.zeros_like(o_ref)

    x = x_ref[...].astype(jnp.float32)
    t = t_ref[...].astype(jnp.float32)
    if approx:
        # EUP reciprocal keeps the VALU slot free; ~1e-4 relative numerics
        # change vs an exact divide (use approx_reciprocal=False if needed).
        err = jnp.abs(x - t) * pl.reciprocal(t, approx=True)
    else:
        err = jnp.abs(x - t) / t
    # NOTE: zero / near-zero targets produce Inf/NaN exactly like torch does.

    def _fold(e):
        # Vector accumulate onto the resident (1, 8, 128) output slab.
        if tile_rows % SUBLANE == 0:
            o_ref[...] += e.reshape(tile_rows // SUBLANE, SUBLANE, lane
                                    ).sum(axis=0).reshape(1, SUBLANE, lane)
        else:
            # Only reachable for tiny single-tile inputs (tile_rows == rows < 8k).
            o_ref[0, 0:1, :] += e.sum(axis=0, keepdims=True)

    # NOTE: int32 row math overflows past ~2^31 elements.
    row0 = (c * nj + j) * tile_rows

    # Interior tiles skip the mask entirely; only the partial last block per
    # core (and phantom blocks from the 2-way core split) pay for the
    # iota + compare + select.
    is_partial = row0 + tile_rows > valid_rows

    @pl.when(jnp.logical_not(is_partial))
    def _():
        _fold(err)

    @pl.when(is_partial)
    def _():
        row_ids = lax.broadcasted_iota(jnp.int32, (tile_rows, lane), 0)
        _fold(jnp.where(row_ids < valid_rows - row0, err, 0.0))


def mape_loss(inp: jax.Array, tgt: jax.Array, *,
              approx_reciprocal: bool = True) -> jax.Array:
    """MAPE loss = mean(|inp - tgt| / tgt). Returns a float32 scalar."""
    assert inp.shape == tgt.shape, "input/target must have the same shape"
    n = inp.size
    if n == 0:
        return jnp.float32(jnp.nan)   # matches torch .mean() of an empty tensor

    x = inp.reshape(-1)
    t = tgt.reshape(-1)

    # Sub-lane tail only: pad <=127 identity elements (x = t = 1 -> error 0) so
    # the (rows, 128) reshape stays a free bitcast.  Row-granular raggedness
    # (partial last tile, phantom core blocks) is masked in-kernel, so no
    # whole-array copy happens in the common n % 128 == 0 case.
    # TODO(synk): a fully copy-free path for n % 128 != 0 would need 1-D blocks
    # (poor sublane layout) or a separate tail kernel.
    pad = (-n) % LANE
    if pad:
        x = jnp.concatenate([x, jnp.ones((pad,), x.dtype)])
        t = jnp.concatenate([t, jnp.ones((pad,), t.dtype)])

    rows = (n + pad) // LANE
    x2 = x.reshape(rows, LANE)
    t2 = t.reshape(rows, LANE)

    ncores, max_tile_rows, core_sem = _chip_config()

    # tile_rows is either a multiple of 8 (max_tile_rows) or the full row
    # extent, so the block shape is always legal on TPU.
    tile_rows = min(max_tile_rows, rows)
    total_blocks = pl.cdiv(rows, tile_rows)
    blocks_per_core = pl.cdiv(total_blocks, ncores)
    last_block = total_blocks - 1

    def in_map(c, j):
        # Clamp so phantom blocks (odd block count split over 2 cores) never
        # DMA out of bounds; their contribution is masked to 0 in-kernel.
        return (jnp.minimum(c * blocks_per_core + j, last_block), 0)

    partials = pl.pallas_call(
        functools.partial(_mape_kernel, valid_rows=rows,
                          approx=approx_reciprocal),
        out_shape=jax.ShapeDtypeStruct((ncores, SUBLANE, LANE), jnp.float32),
        grid_spec=pltpu.PrefetchScalarGridSpec(
            num_scalar_prefetch=0,
            grid=(ncores, blocks_per_core),
            in_specs=[
                pl.BlockSpec((tile_rows, LANE), in_map),
                pl.BlockSpec((tile_rows, LANE), in_map),
            ],
            out_specs=pl.BlockSpec((1, SUBLANE, LANE), lambda c, j: (c, 0, 0)),
        ),
        compiler_params=pltpu.CompilerParams(
            dimension_semantics=(core_sem, pltpu.ARBITRARY),
        ),
    )(x2, t2)

    return jnp.sum(partials) * (1.0 / float(n))


if __name__ == "__main__":
    key = jax.random.PRNGKey(0)
    k1, k2 = jax.random.split(key)

    # Small NCHW-shaped example inputs, consistent with typical usage.
    shape = (2, 4, 16, 16)
    inp = jax.random.normal(k1, shape, dtype=jnp.float32)
    # Keep target away from zero (MAPE divides by target).
    tgt = jax.random.uniform(k2, shape, dtype=jnp.float32, minval=0.5, maxval=2.0)

    # Pure-JAX reference.
    ref = jnp.mean(jnp.abs(inp - tgt) / tgt)

    # Fast path: EUP approximate reciprocal.
    loss = mape_loss(inp, tgt)
    jax.block_until_ready(loss)
    assert jnp.allclose(loss, ref, rtol=2e-3, atol=1e-6), (loss, ref)

    # Exact-divide path (torch-faithful numerics).
    loss_exact = mape_loss(inp, tgt, approx_reciprocal=False)
    jax.block_until_ready(loss_exact)
    assert jnp.allclose(loss_exact, ref, rtol=1e-5, atol=1e-6), (loss_exact, ref)

    print("KERNEL_OK")
</pallas_src>

<mosaic_0001>
module attributes {stable_mosaic.version = 11 : i64} {
  func.func @_mape_kernel(%arg0: i32, %arg1: i32, %arg2: memref<16x128xf32, #tpu.memory_space<vmem>>, %arg3: memref<16x128xf32, #tpu.memory_space<vmem>>, %arg4: memref<1x8x128xf32, #tpu.memory_space<vmem>>) attributes {dimension_semantics = [#tpu.dimension_semantics<arbitrary>, #tpu.dimension_semantics<arbitrary>], iteration_bounds = array<i64: 1, 1>, scalar_prefetch = 0 : i64, scratch_operands = 0 : i64, tpu.core_type = #tpu.core_type<tc>, window_params = [{transform_indices = @transform_0, window_bounds = array<i64: 16, 128>}, {transform_indices = @transform_1, window_bounds = array<i64: 16, 128>}, {transform_indices = @transform_2, window_bounds = array<i64: 1, 8, 128>}]} {
    %c0_i32 = arith.constant 0 : i32
    %0 = arith.cmpi eq, %arg1, %c0_i32 : i32
    %1 = arith.extui %0 : i1 to i32
    %c0_i32_0 = arith.constant 0 : i32
    %2 = arith.cmpi ne, %1, %c0_i32_0 : i32
    scf.if %2 {
      %cst = arith.constant 0.000000e+00 : f32
      %19 = vector.broadcast %cst : f32 to vector<1x8x128xf32>
      %c0_8 = arith.constant 0 : index
      %c0_9 = arith.constant 0 : index
      %c0_10 = arith.constant 0 : index
      %20 = vector.load %arg4[%c0_8, %c0_9, %c0_10] : memref<1x8x128xf32, #tpu.memory_space<vmem>>, vector<1x8x128xf32>
      tpu.vector_store %arg4[%c0_8, %c0_9, %c0_10], %19 {strides = array<i32>} : memref<1x8x128xf32, #tpu.memory_space<vmem>>, vector<1x8x128xf32>,
    } else {
    }
    %c0 = arith.constant 0 : index
    %c0_1 = arith.constant 0 : index
    %3 = vector.load %arg2[%c0, %c0_1] : memref<16x128xf32, #tpu.memory_space<vmem>>, vector<16x128xf32>
    %c0_2 = arith.constant 0 : index
    %c0_3 = arith.constant 0 : index
    %4 = vector.load %arg3[%c0_2, %c0_3] : memref<16x128xf32, #tpu.memory_space<vmem>>, vector<16x128xf32>
    %5 = arith.subf %3, %4 : vector<16x128xf32>
    %6 = math.absf %5 : vector<16x128xf32>
    %7 = tpu.reciprocal %4 {approx = true} : vector<16x128xf32> -> vector<16x128xf32>
    %8 = arith.mulf %6, %7 : vector<16x128xf32>
    %c1_i32 = arith.constant 1 : i32
    %9 = arith.muli %arg0, %c1_i32 : i32
    %10 = arith.addi %9, %arg1 : i32
    %c16_i32 = arith.constant 16 : i32
    %11 = arith.muli %10, %c16_i32 : i32
    %c16_i32_4 = arith.constant 16 : i32
    %12 = arith.addi %11, %c16_i32_4 : i32
    %c16_i32_5 = arith.constant 16 : i32
    %13 = arith.cmpi sgt, %12, %c16_i32_5 : i32
    %true = arith.constant true
    %14 = arith.xori %13, %true : i1
    %15 = arith.extui %14 : i1 to i32
    %c0_i32_6 = arith.constant 0 : i32
    %16 = arith.cmpi ne, %15, %c0_i32_6 : i32
    scf.if %16 {
      %c0_8 = arith.constant 0 : index
      %c0_9 = arith.constant 0 : index
      %c0_10 = arith.constant 0 : index
      %19 = vector.load %arg4[%c0_8, %c0_9, %c0_10] : memref<1x8x128xf32, #tpu.memory_space<vmem>>, vector<1x8x128xf32>
      %20 = vector.shape_cast %8 : vector<16x128xf32> to vector<2x8x128xf32>
      %cst = arith.constant dense<0.000000e+00> : vector<8x128xf32>
      %21 = vector.multi_reduction <add>, %20, %cst [0] : vector<2x8x128xf32> to vector<8x128xf32>
      %22 = vector.shape_cast %21 : vector<8x128xf32> to vector<1x8x128xf32>
      %23 = arith.addf %19, %22 : vector<1x8x128xf32>
      %c0_11 = arith.constant 0 : index
      %c0_12 = arith.constant 0 : index
      %c0_13 = arith.constant 0 : index
      %24 = vector.load %arg4[%c0_11, %c0_12, %c0_13] : memref<1x8x128xf32, #tpu.memory_space<vmem>>, vector<1x8x128xf32>
      tpu.vector_store %arg4[%c0_11, %c0_12, %c0_13], %23 {strides = array<i32>} : memref<1x8x128xf32, #tpu.memory_space<vmem>>, vector<1x8x128xf32>,
    } else {
    }
    %17 = arith.extui %13 : i1 to i32
    %c0_i32_7 = arith.constant 0 : i32
    %18 = arith.cmpi ne, %17, %c0_i32_7 : i32
    scf.if %18 {
      %19 = tpu.iota {dimensions = array<i32: 0>} : vector<16x128xi32>
      %c16_i32_8 = arith.constant 16 : i32
      %20 = arith.subi %c16_i32_8, %11 : i32
      %21 = vector.broadcast %20 : i32 to vector<16x128xi32>
      %22 = arith.cmpi slt, %19, %21 : vector<16x128xi32>
      %cst = arith.constant 0.000000e+00 : f32
      %23 = vector.broadcast %cst : f32 to vector<16x128xf32>
      %24 = arith.select %22, %8, %23 : vector<16x128xi1>, vector<16x128xf32>
      %c0_9 = arith.constant 0 : index
      %c0_10 = arith.constant 0 : index
      %c0_11 = arith.constant 0 : index
      %25 = vector.load %arg4[%c0_9, %c0_10, %c0_11] : memref<1x8x128xf32, #tpu.memory_space<vmem>>, vector<1x8x128xf32>
      %26 = vector.shape_cast %24 : vector<16x128xf32> to vector<2x8x128xf32>
      %cst_12 = arith.constant dense<0.000000e+00> : vector<8x128xf32>
      %27 = vector.multi_reduction <add>, %26, %cst_12 [0] : vector<2x8x128xf32> to vector<8x128xf32>
      %28 = vector.shape_cast %27 : vector<8x128xf32> to vector<1x8x128xf32>
      %29 = arith.addf %25, %28 : vector<1x8x128xf32>
      %c0_13 = arith.constant 0 : index
      %c0_14 = arith.constant 0 : index
      %c0_15 = arith.constant 0 : index
      %30 = vector.load %arg4[%c0_13, %c0_14, %c0_15] : memref<1x8x128xf32, #tpu.memory_space<vmem>>, vector<1x8x128xf32>
      tpu.vector_store %arg4[%c0_13, %c0_14, %c0_15], %29 {strides = array<i32>} : memref<1x8x128xf32, #tpu.memory_space<vmem>>, vector<1x8x128xf32>,
    } else {
    }
    return
  }
  func.func @transform_0(%arg0: i32, %arg1: i32) -> (i32, i32) {
    %c1_i32 = arith.constant 1 : i32
    %0 = arith.muli %arg0, %c1_i32 : i32
    %1 = arith.addi %0, %arg1 : i32
    %c0_i32 = arith.constant 0 : i32
    %2 = arith.minsi %1, %c0_i32 : i32
    %c0_i32_0 = arith.constant 0 : i32
    %c0_i32_1 = arith.constant 0 : i32
    return %2, %c0_i32_0 : i32, i32
  }
  func.func @transform_1(%arg0: i32, %arg1: i32) -> (i32, i32) {
    %c1_i32 = arith.constant 1 : i32
    %0 = arith.muli %arg0, %c1_i32 : i32
    %1 = arith.addi %0, %arg1 : i32
    %c0_i32 = arith.constant 0 : i32
    %2 = arith.minsi %1, %c0_i32 : i32
    %c0_i32_0 = arith.constant 0 : i32
    %c0_i32_1 = arith.constant 0 : i32
    return %2, %c0_i32_0 : i32, i32
  }
  func.func @transform_2(%arg0: i32, %arg1: i32) -> (i32, i32, i32) {
    %c0_i32 = arith.constant 0 : i32
    %c0_i32_0 = arith.constant 0 : i32
    %c0_i32_1 = arith.constant 0 : i32
    return %arg0, %c0_i32, %c0_i32_0 : i32, i32, i32
  }
}

</mosaic_0001>

<llo_original>
// kernel: tpu_custom_call.1
$region0: #{tpu_custom_call.1}
  #allocation0 [shape = 'u32[]', space=smem, size = 0x4, offset = 0x4, fixed_abs, tag = 'smem constant byte address 0x4 - core index']
  #allocation1 [shape = 'u32[144,128]{1,0:T(1,128)}', space=vmem, size = 0x12000, scoped, tag = 'internal scratch']
  %s0 = inlined_call_operand.hbm [shape: f32[16,128], index: 0, kind: input, shape index: {}]
  %s1 = inlined_call_operand.hbm [shape: f32[16,128], index: 1, kind: input, shape index: {}]
  %s2 = inlined_call_operand.hbm [shape: f32[1,8,128], index: 2, kind: output, shape index: {}]
  %s3 = sld [smem:[#allocation0]]
  $region38: #{tpu_custom_call.1} parent=0
    _
  %s5 = ssub.s32 1, %s3
  %s6 = scalar_select 0, %s5, %s3
  $region1: #{tpu_custom_call.1} parent=0
    #allocation2 [shape = 'u8[8192]{0}', space=vmem, size = 0x2000, scoped, tag = 'input window, operand 0, single buffered']
    #allocation3 [shape = 's32[1]{0}', space=sflag, size = 0x4, scoped, tag = 'scoped memory for tpu_custom_call.1']
    #allocation4 [shape = 's32[1]{0}', space=sflag, size = 0x4, scoped, tag = 'scoped memory for tpu_custom_call.1']
    #allocation5 [shape = 'u8[8192]{0}', space=vmem, size = 0x2000, scoped, tag = 'input window, operand 1, single buffered']
    #allocation6 [shape = 's32[1]{0}', space=sflag, size = 0x4, scoped, tag = 'scoped memory for tpu_custom_call.1']
    #allocation7 [shape = 'u8[4096]{0}', space=vmem, size = 0x1000, scoped, tag = 'output window, operand 0, single buffered']
    %7 = vsyncpa [#allocation3], 0
    %8 = vsyncpa [#allocation6], 0
    %9 = vsyncpa [#allocation4], 0
    // Predicated region
    $region2: #{tpu_custom_call.1} parent=1 // pred_check
      _
    $region3: #{tpu_custom_call.1} parent=1 // pred_check_branch
      %11 = sbr.rel (0) target = $region5
    $region4: #{tpu_custom_call.1} parent=1 // pred_region
      %s12 = sadd.s32 0, 0
      %p13 = scmp.lt.s32.totalorder %s12, 0
      %s14 = scalar_select %p13, %s12, 0
      %s15 = smul.u32 2, %s14
      %s17 = ssub.s32 256, 256
      %18 = vsyncadd [#allocation3], %s17
      %s19 = smul.addr %s15, 128
      %s20 = scalar_lea.hbm %s0, %s19
      %s21 = sshll.u32 [#allocation2], 4
      %s22 = int_to_ptr.vmem [resolvable:$true] %s21
      %27 = dma.hbm_to_vmem [thread:$0]  %s20, 256, %s22, [#allocation3], 128, 128, 8
    $region5: #{tpu_custom_call.1} parent=1 // pred_fallthru
      _
    // Predicated region
    $region6: #{tpu_custom_call.1} parent=1 // pred_check
      _
    $region7: #{tpu_custom_call.1} parent=1 // pred_check_branch
      %29 = sbr.rel (0) target = $region9
    $region8: #{tpu_custom_call.1} parent=1 // pred_region
      %s30 = sadd.s32 0, 0
      %p31 = scmp.lt.s32.totalorder %s30, 0
      %s32 = scalar_select %p31, %s30, 0
      %s33 = smul.u32 2, %s32
      %s35 = ssub.s32 256, 256
      %36 = vsyncadd [#allocation6], %s35
      %s37 = smul.addr %s33, 128
      %s38 = scalar_lea.hbm %s1, %s37
      %s39 = sshll.u32 [#allocation5], 4
      %s40 = int_to_ptr.vmem [resolvable:$true] %s39
      %45 = dma.hbm_to_vmem [thread:$0]  %s38, 256, %s40, [#allocation6], 128, 128, 8
    $region9: #{tpu_custom_call.1} parent=1 // pred_fallthru
      _
    // Predicated region
    $region10: #{tpu_custom_call.1} parent=1 // pred_check
      _
    $region11: #{tpu_custom_call.1} parent=1 // pred_check_branch
      %47 = sbr.rel (0) target = $region13
    $region12: #{tpu_custom_call.1} parent=1 // pred_region
      %48 = dma.done [#allocation3], 256
    $region13: #{tpu_custom_call.1} parent=1 // pred_fallthru
      _
    // Predicated region
    $region14: #{tpu_custom_call.1} parent=1 // pred_check
      _
    $region15: #{tpu_custom_call.1} parent=1 // pred_check_branch
      %50 = sbr.rel (0) target = $region17
    $region16: #{tpu_custom_call.1} parent=1 // pred_region
      %51 = dma.done [#allocation6], 256
    $region17: #{tpu_custom_call.1} parent=1 // pred_fallthru
      _
    %s52 = sadd.s32 0, 0
    %p53 = scmp.lt.s32.totalorder %s52, 0
    %s54 = scalar_select %p53, %s52, 0
    %s55 = smul.u32 2, %s54
    %s56 = sadd.s32 0, 0
    %p57 = scmp.lt.s32.totalorder %s56, 0
    %s58 = scalar_select %p57, %s56, 0
    %s59 = smul.u32 2, %s58
    %p60 = scmp.eq.s32.totalorder 0, 0
    // Predicated region
    $region18: #{tpu_custom_call.1} parent=1 // pred_check
      %p61 = pneg %p60
    $region19: #{tpu_custom_call.1} parent=1 // pred_check_branch
      %63 = sbr.rel (%p61) target = $region21
    $region20: #{tpu_custom_call.1} parent=1 // pred_region
      %64 = vst [vmem:[#allocation7] sm:$0xff] 0.0
    $region21: #{tpu_custom_call.1} parent=1 // pred_fallthru
      _
    %v65 = vld [vmem:[#allocation2] sm:$0xff]
    %v66 = vld [vmem:[#allocation2 + $0x8] sm:$0xff]
    %v67 = vld [vmem:[#allocation5] sm:$0xff]
    %v68 = vld [vmem:[#allocation5 + $0x8] sm:$0xff]
    %v69 = vsub.f32 %v65, %v67
    %v70 = vsub.f32 %v66, %v68
    %v71 = vand.u32 2147483647, %v69
    %v72 = vand.u32 2147483647, %v70
    %v73 = vrcp.pop %v67
    %v74 = vrcp.pop %v68
    %v75 = vmul.f32 %v71, %v73
    %v76 = vmul.f32 %v72, %v74
    %s77 = sadd.s32 0, 0
    %s78 = smul.u32 %s77, 16
    %s79 = sadd.s32 %s78, 16
    %p80 = scmp.gt.s32.totalorder %s79, 16
    %p81 = scmp.le.s32.totalorder %s79, 16
    // Predicated region
    $region22: #{tpu_custom_call.1} parent=1 // pred_check
      %p82 = pneg %p81
    $region23: #{tpu_custom_call.1} parent=1 // pred_check_branch
      %84 = sbr.rel (%p82) target = $region25
    $region24: #{tpu_custom_call.1} parent=1 // pred_region
      %v85 = vld [vmem:[#allocation7] sm:$0xff]
      %v86 = vadd.f32 %v75, %v76
      %v87 = vadd.f32 %v85, %v86
      %88 = vst [vmem:[#allocation7] sm:$0xff] %v87
    $region25: #{tpu_custom_call.1} parent=1 // pred_fallthru
      _
    // Predicated region
    $region26: #{tpu_custom_call.1} parent=1 // pred_check
      %p89 = pneg %p80
    $region27: #{tpu_custom_call.1} parent=1 // pred_check_branch
      %91 = sbr.rel (%p89) target = $region29
    $region28: #{tpu_custom_call.1} parent=1 // pred_region
      %v92 = vlaneseq
      %v93 = vshrl.u32 %v92, 7
      %v94 = vadd.s32 %v93, 8
      %s95 = ssub.s32 16, %s78
      %v96 = vstv %s95
      %vm97 = vcmp.lt.s32.totalorder %v93, %v96
      %vm98 = vcmp.lt.s32.totalorder %v94, %v96
      %v99 = vsel %vm97, %v75, 0.0
      %v100 = vsel %vm98, %v76, 0.0
      %v101 = vld [vmem:[#allocation7] sm:$0xff]
      %v102 = vadd.f32 %v99, %v100
      %v103 = vadd.f32 %v101, %v102
      %104 = vst [vmem:[#allocation7] sm:$0xff] %v103
    $region29: #{tpu_custom_call.1} parent=1 // pred_fallthru
      _
    // Predicated region
    $region30: #{tpu_custom_call.1} parent=1 // pred_check
      _
    $region31: #{tpu_custom_call.1} parent=1 // pred_check_branch
      %106 = sbr.rel (0) target = $region33
    $region32: #{tpu_custom_call.1} parent=1 // pred_region
      %s108 = ssub.s32 128, 128
      %109 = vsyncadd [#allocation4], %s108
      %s111 = sshll.u32 [#allocation7], 4
      %s112 = int_to_ptr.vmem [resolvable:$true] %s111
      %114 = dma.vmem_to_hbm [thread:$0]  %s112, 128, %s2, [#allocation4]
    $region33: #{tpu_custom_call.1} parent=1 // pred_fallthru
      _
    // Predicated region
    $region34: #{tpu_custom_call.1} parent=1 // pred_check
      _
    $region35: #{tpu_custom_call.1} parent=1 // pred_check_branch
      %116 = sbr.rel (0) target = $region37
    $region36: #{tpu_custom_call.1} parent=1 // pred_region
      %117 = dma.done [#allocation4], 128
    $region37: #{tpu_custom_call.1} parent=1 // pred_fallthru
      _
    %118 = vsyncpa [#allocation3], 1
    %119 = vsyncpa [#allocation6], 1
    %120 = vsyncpa [#allocation4], 1

</llo_original>
